<compile_context>
chip_gen: v6e
topology: v6e:2x2x1
jax: 0.10.0
libtpu: 0.0.40
codegen_flags: <defaults>
</compile_context>

<pallas_src>
import functools

import jax
import jax.numpy as jnp
from jax import lax
from jax.experimental import pallas as pl
from jax.experimental.pallas import tpu as pltpu


def _cdiv(a, b):
    return -(-a // b)


def _round_up(x, m):
    return ((x + m - 1) // m) * m


def _sortino_kernel(r_ref, o_ref, sum_r, sum_d2, *, inv_seq_len, tail,
                    risk_free_rate, target_return, ann_sqrt, eps):
    k = pl.program_id(1)
    nk = pl.num_programs(1)

    # Zero the per-row accumulators on the first seq tile.
    @pl.when(k == 0)
    def _init():
        sum_r[...] = jnp.zeros_like(sum_r)
        sum_d2[...] = jnp.zeros_like(sum_d2)

    r = r_ref[...].astype(jnp.float32)                       # (bm, bs)
    downside = jnp.maximum(jnp.float32(target_return) - r, 0.0)
    d2 = downside * downside

    if tail == 0:
        # Every seq tile is fully in-bounds: accumulate unmasked (no
        # per-element masking cost on the streaming path).
        sum_r[...] += jnp.sum(r, axis=1, keepdims=True)
        sum_d2[...] += jnp.sum(d2, axis=1, keepdims=True)
    else:
        # Only the last seq tile is ragged.  Interior tiles stay unmasked;
        # the tail tile masks BOTH sums because the out-of-bounds region of a
        # boundary block contains garbage, not zeros.  `tail` is a trace-time
        # constant, so no per-element index offset is needed.
        @pl.when(k < nk - 1)
        def _interior():
            sum_r[...] += jnp.sum(r, axis=1, keepdims=True)
            sum_d2[...] += jnp.sum(d2, axis=1, keepdims=True)

        @pl.when(k == nk - 1)
        def _tail():
            valid = lax.broadcasted_iota(jnp.int32, r.shape, 1) < tail
            sum_r[...] += jnp.sum(jnp.where(valid, r, 0.0),
                                  axis=1, keepdims=True)
            sum_d2[...] += jnp.sum(jnp.where(valid, d2, 0.0),
                                   axis=1, keepdims=True)

    # Finalize on the last seq tile: means over the *true* S, fused rsqrt,
    # annualization folded into the same multiply.
    @pl.when(k == nk - 1)
    def _finalize():
        mean_ret = sum_r[...] * inv_seq_len                   # (bm, 1)
        downside_var = sum_d2[...] * inv_seq_len              # (bm, 1)
        sortino = (mean_ret - risk_free_rate) * (
            lax.rsqrt(downside_var + eps) * ann_sqrt)
        o_ref[...] = sortino


def sortino_ratio_loss(returns, *, risk_free_rate=0.0, target_return=0.0,
                       annualization_factor=252, eps=1e-6,
                       block_batch=256, block_seq=None,
                       vmem_tile_bytes=8 * 1024 * 1024):
    """Negative Sortino ratio of `returns` [batch, seq]. Returns a f32 scalar."""
    B, S = returns.shape
    itemsize = jnp.dtype(returns.dtype).itemsize

    # Sublane multiple depends on packing (8 for f32, 16 for bf16, 32 for i8).
    sub = max(8, 32 // max(itemsize, 1))

    # --- Batch tiling: minimize padding waste and prefer >=2 batch tiles so
    # both TensorCores are used on v7x for this mem-bound kernel.
    if B <= sub:
        bm = B                                   # full-dim block (allowed)
    else:
        n_bt = _cdiv(B, block_batch)
        if B >= 2 * sub:
            n_bt = max(n_bt, 2)
        bm = _round_up(_cdiv(B, n_bt), sub)
        bm = min(bm, (B // sub) * sub)           # never exceed the array dim
    n_bt = _cdiv(B, bm)

    # --- Seq tiling: ~vmem_tile_bytes per input buffer (double-buffered by
    # the pipeline), lane-aligned.  If the whole row fits, use a single tile
    # equal to the full dim (no masking needed at all).
    bs_cap = max(128, (vmem_tile_bytes // (bm * itemsize)) // 128 * 128)
    if block_seq is not None:
        bs_cap = min(bs_cap, max(128, (block_seq // 128) * 128))
    bs = S if S <= bs_cap else bs_cap
    n_st = _cdiv(S, bs)
    tail = S % bs                                # 0 => masking elided at trace time

    ann_sqrt = (float(annualization_factor) ** 0.5
                if annualization_factor > 1 else 1.0)

    kernel = functools.partial(
        _sortino_kernel,
        inv_seq_len=float(1.0 / S),
        tail=int(tail),
        risk_free_rate=float(risk_free_rate),
        target_return=float(target_return),
        ann_sqrt=float(ann_sqrt),
        eps=float(eps),
    )

    out = pl.pallas_call(
        kernel,
        out_shape=jax.ShapeDtypeStruct((B, 1), jnp.float32),
        grid_spec=pltpu.PrefetchScalarGridSpec(
            num_scalar_prefetch=0,
            grid=(n_bt, n_st),
            in_specs=[pl.BlockSpec((bm, bs), lambda i, k: (i, k))],
            out_specs=pl.BlockSpec((bm, 1), lambda i, k: (i, 0)),
            scratch_shapes=[pltpu.VMEM((bm, 1), jnp.float32),
                            pltpu.VMEM((bm, 1), jnp.float32)],
        ),
        compiler_params=pltpu.CompilerParams(
            dimension_semantics=("parallel", "arbitrary"),
            vmem_limit_bytes=32 * 1024 * 1024),
        cost_estimate=pl.CostEstimate(
            flops=6 * B * S,
            transcendentals=B,
            bytes_accessed=B * S * itemsize + B * 4),
    )(returns)

    # Per-row sortino is exact (no padded rows exist in `out`); reduce over
    # batch outside the kernel.
    return -jnp.mean(out)


def _reference(returns, risk_free_rate=0.0, target_return=0.0,
               annualization_factor=252, eps=1e-6):
    r = returns.astype(jnp.float32)
    mean_ret = jnp.mean(r, axis=1)
    downside = jnp.maximum(target_return - r, 0.0)
    downside_var = jnp.mean(downside ** 2, axis=1)
    downside_dev = jnp.sqrt(downside_var + eps)
    sortino = (mean_ret - risk_free_rate) / downside_dev
    if annualization_factor > 1:
        sortino = sortino * jnp.sqrt(jnp.float32(annualization_factor))
    return -jnp.mean(sortino)


if __name__ == "__main__":
    key = jax.random.PRNGKey(0)
    k1, k2, k3, k4 = jax.random.split(key, 4)

    fn = jax.jit(functools.partial(sortino_ratio_loss, target_return=0.001))

    # 1) Tiny shape from the module spec (single full-dim block on both axes).
    r1 = jax.random.normal(k1, (2, 8), dtype=jnp.float32) * 0.02
    loss1 = fn(r1)
    jax.block_until_ready(loss1)
    ref1 = _reference(r1, target_return=0.001)
    assert jnp.allclose(loss1, ref1, rtol=1e-5, atol=1e-6), (loss1, ref1)

    # 2) Non-aligned shape with a forced small seq tile: exercises boundary
    #    blocks on both axes, the streaming accumulator, and the tail mask.
    fn_small_tile = jax.jit(functools.partial(
        sortino_ratio_loss, target_return=0.001, block_seq=128))
    r2 = jax.random.normal(k2, (10, 300), dtype=jnp.float32) * 0.02
    loss2 = fn_small_tile(r2)
    jax.block_until_ready(loss2)
    ref2 = _reference(r2, target_return=0.001)
    assert jnp.allclose(loss2, ref2, rtol=1e-5, atol=1e-6), (loss2, ref2)

    # 3) bf16 input (narrow-dtype HBM path, f32 accumulation, ragged batch).
    r3 = (jax.random.normal(k3, (24, 4000), dtype=jnp.float32) * 0.02
          ).astype(jnp.bfloat16)
    loss3 = fn(r3)
    jax.block_until_ready(loss3)
    ref3 = _reference(r3, target_return=0.001)
    assert jnp.allclose(loss3, ref3, rtol=1e-4, atol=1e-5), (loss3, ref3)

    # 4) Multi-seq-tile f32 with ragged tail and two batch tiles.
    fn_tile256 = jax.jit(functools.partial(
        sortino_ratio_loss, target_return=0.001, block_seq=256))
    r4 = jax.random.normal(k4, (16, 1000), dtype=jnp.float32) * 0.02
    loss4 = fn_tile256(r4)
    jax.block_until_ready(loss4)
    ref4 = _reference(r4, target_return=0.001)
    assert jnp.allclose(loss4, ref4, rtol=1e-5, atol=1e-6), (loss4, ref4)

    print("KERNEL_OK")
</pallas_src>

<mosaic_0001>
module attributes {stable_mosaic.version = 11 : i64} {
  func.func @_sortino_kernel(%arg0: i32, %arg1: i32, %arg2: memref<2x8xf32, #tpu.memory_space<vmem>>, %arg3: memref<2x1xf32, #tpu.memory_space<vmem>>, %arg4: memref<2x1xf32, #tpu.memory_space<vmem>>, %arg5: memref<2x1xf32, #tpu.memory_space<vmem>>) attributes {dimension_semantics = [#tpu.dimension_semantics<parallel>, #tpu.dimension_semantics<arbitrary>], iteration_bounds = array<i64: 1, 1>, scalar_prefetch = 0 : i64, scratch_operands = 2 : i64, tpu.core_type = #tpu.core_type<tc>, window_params = [{transform_indices = @transform_0, window_bounds = array<i64: 2, 8>}, {transform_indices = @transform_1, window_bounds = array<i64: 2, 1>}]} {
    %c0_i32 = arith.constant 0 : i32
    %0 = arith.cmpi eq, %arg1, %c0_i32 : i32
    %1 = arith.extui %0 : i1 to i32
    %c0_i32_0 = arith.constant 0 : i32
    %2 = arith.cmpi ne, %1, %c0_i32_0 : i32
    scf.if %2 {
      %cst_15 = arith.constant 0.000000e+00 : f32
      %22 = vector.broadcast %cst_15 : f32 to vector<2x1xf32>
      %c0_16 = arith.constant 0 : index
      %c0_17 = arith.constant 0 : index
      %23 = vector.load %arg4[%c0_16, %c0_17] : memref<2x1xf32, #tpu.memory_space<vmem>>, vector<2x1xf32>
      tpu.vector_store %arg4[%c0_16, %c0_17], %22 {strides = array<i32>} : memref<2x1xf32, #tpu.memory_space<vmem>>, vector<2x1xf32>,
      %cst_18 = arith.constant 0.000000e+00 : f32
      %24 = vector.broadcast %cst_18 : f32 to vector<2x1xf32>
      %c0_19 = arith.constant 0 : index
      %c0_20 = arith.constant 0 : index
      %25 = vector.load %arg5[%c0_19, %c0_20] : memref<2x1xf32, #tpu.memory_space<vmem>>, vector<2x1xf32>
      tpu.vector_store %arg5[%c0_19, %c0_20], %24 {strides = array<i32>} : memref<2x1xf32, #tpu.memory_space<vmem>>, vector<2x1xf32>,
    } else {
    }
    %c0 = arith.constant 0 : index
    %c0_1 = arith.constant 0 : index
    %3 = vector.load %arg2[%c0, %c0_1] : memref<2x8xf32, #tpu.memory_space<vmem>>, vector<2x8xf32>
    %cst = arith.constant 1.000000e-03 : f32
    %4 = vector.broadcast %cst : f32 to vector<2x8xf32>
    %5 = arith.subf %4, %3 : vector<2x8xf32>
    %cst_2 = arith.constant 0.000000e+00 : f32
    %6 = vector.broadcast %cst_2 : f32 to vector<2x8xf32>
    %7 = arith.maximumf %5, %6 : vector<2x8xf32>
    %8 = arith.mulf %7, %7 : vector<2x8xf32>
    %c0_3 = arith.constant 0 : index
    %c0_4 = arith.constant 0 : index
    %9 = vector.load %arg4[%c0_3, %c0_4] : memref<2x1xf32, #tpu.memory_space<vmem>>, vector<2x1xf32>
    %cst_5 = arith.constant dense<0.000000e+00> : vector<2xf32>
    %10 = vector.multi_reduction <add>, %3, %cst_5 [1] : vector<2x8xf32> to vector<2xf32>
    %11 = vector.shape_cast %10 : vector<2xf32> to vector<2x1xf32>
    %12 = arith.addf %9, %11 : vector<2x1xf32>
    %c0_6 = arith.constant 0 : index
    %c0_7 = arith.constant 0 : index
    %13 = vector.load %arg4[%c0_6, %c0_7] : memref<2x1xf32, #tpu.memory_space<vmem>>, vector<2x1xf32>
    tpu.vector_store %arg4[%c0_6, %c0_7], %12 {strides = array<i32>} : memref<2x1xf32, #tpu.memory_space<vmem>>, vector<2x1xf32>,
    %c0_8 = arith.constant 0 : index
    %c0_9 = arith.constant 0 : index
    %14 = vector.load %arg5[%c0_8, %c0_9] : memref<2x1xf32, #tpu.memory_space<vmem>>, vector<2x1xf32>
    %cst_10 = arith.constant dense<0.000000e+00> : vector<2xf32>
    %15 = vector.multi_reduction <add>, %8, %cst_10 [1] : vector<2x8xf32> to vector<2xf32>
    %16 = vector.shape_cast %15 : vector<2xf32> to vector<2x1xf32>
    %17 = arith.addf %14, %16 : vector<2x1xf32>
    %c0_11 = arith.constant 0 : index
    %c0_12 = arith.constant 0 : index
    %18 = vector.load %arg5[%c0_11, %c0_12] : memref<2x1xf32, #tpu.memory_space<vmem>>, vector<2x1xf32>
    tpu.vector_store %arg5[%c0_11, %c0_12], %17 {strides = array<i32>} : memref<2x1xf32, #tpu.memory_space<vmem>>, vector<2x1xf32>,
    %c0_i32_13 = arith.constant 0 : i32
    %19 = arith.cmpi eq, %arg1, %c0_i32_13 : i32
    %20 = arith.extui %19 : i1 to i32
    %c0_i32_14 = arith.constant 0 : i32
    %21 = arith.cmpi ne, %20, %c0_i32_14 : i32
    scf.if %21 {
      %c0_15 = arith.constant 0 : index
      %c0_16 = arith.constant 0 : index
      %22 = vector.load %arg4[%c0_15, %c0_16] : memref<2x1xf32, #tpu.memory_space<vmem>>, vector<2x1xf32>
      %cst_17 = arith.constant 1.250000e-01 : f32
      %23 = vector.broadcast %cst_17 : f32 to vector<2x1xf32>
      %24 = arith.mulf %22, %23 : vector<2x1xf32>
      %c0_18 = arith.constant 0 : index
      %c0_19 = arith.constant 0 : index
      %25 = vector.load %arg5[%c0_18, %c0_19] : memref<2x1xf32, #tpu.memory_space<vmem>>, vector<2x1xf32>
      %cst_20 = arith.constant 1.250000e-01 : f32
      %26 = vector.broadcast %cst_20 : f32 to vector<2x1xf32>
      %27 = arith.mulf %25, %26 : vector<2x1xf32>
      %cst_21 = arith.constant 0.000000e+00 : f32
      %28 = vector.broadcast %cst_21 : f32 to vector<2x1xf32>
      %29 = arith.subf %24, %28 : vector<2x1xf32>
      %cst_22 = arith.constant 9.99999997E-7 : f32
      %30 = vector.broadcast %cst_22 : f32 to vector<2x1xf32>
      %31 = arith.addf %27, %30 : vector<2x1xf32>
      %32 = math.rsqrt %31 : vector<2x1xf32>
      %cst_23 = arith.constant 15.8745079 : f32
      %33 = vector.broadcast %cst_23 : f32 to vector<2x1xf32>
      %34 = arith.mulf %32, %33 : vector<2x1xf32>
      %35 = arith.mulf %29, %34 : vector<2x1xf32>
      %c0_24 = arith.constant 0 : index
      %c0_25 = arith.constant 0 : index
      %36 = vector.load %arg3[%c0_24, %c0_25] : memref<2x1xf32, #tpu.memory_space<vmem>>, vector<2x1xf32>
      tpu.vector_store %arg3[%c0_24, %c0_25], %35 {strides = array<i32>} : memref<2x1xf32, #tpu.memory_space<vmem>>, vector<2x1xf32>,
    } else {
    }
    return
  }
  func.func @transform_0(%arg0: i32, %arg1: i32) -> (i32, i32) {
    %c0_i32 = arith.constant 0 : i32
    return %arg0, %arg1 : i32, i32
  }
  func.func @transform_1(%arg0: i32, %arg1: i32) -> (i32, i32) {
    %c0_i32 = arith.constant 0 : i32
    %c0_i32_0 = arith.constant 0 : i32
    return %arg0, %c0_i32 : i32, i32
  }
}

</mosaic_0001>

<llo_original>
// kernel: sortino_ratio_loss.1
$region0: #{sortino_ratio_loss.1}
  #allocation0 [shape = 'u32[]', space=smem, size = 0x4, offset = 0x4, fixed_abs, tag = 'smem constant byte address 0x4 - core index']
  #allocation1 [shape = 'u32[144,128]{1,0:T(1,128)}', space=vmem, size = 0x12000, scoped, tag = 'internal scratch']
  #allocation2 [shape = 'f32[2,1]{1,0:T(2,128)}', space=vmem, size = 0x400, scoped, tag = 'scratch operand']
  #allocation3 [shape = 'f32[2,1]{1,0:T(2,128)}', space=vmem, size = 0x400, scoped, tag = 'scratch operand']
  %s0 = inlined_call_operand.hbm [shape: f32[2,8], index: 0, kind: input, shape index: {}]
  %s1 = inlined_call_operand.vmem [shape: f32[2,1], index: 1, kind: output, shape index: {}]
  %s2 = sld [smem:[#allocation0]]
  $region26: #{sortino_ratio_loss.1} parent=0
    _
  %s4 = ssub.s32 1, %s2
  %s5 = scalar_select 0, %s4, %s2
  $region1: #{sortino_ratio_loss.1} parent=0
    #allocation4 [shape = 'u8[1024]{0}', space=vmem, size = 0x400, scoped, tag = 'input window, operand 0, single buffered']
    #allocation5 [shape = 's32[1]{0}', space=sflag, size = 0x4, scoped, tag = 'scoped memory for sortino_ratio_loss.1']
    %6 = vsyncpa [#allocation5], 0
    // Predicated region
    $region2: #{sortino_ratio_loss.1} parent=1 // pred_check
      _
    $region3: #{sortino_ratio_loss.1} parent=1 // pred_check_branch
      %8 = sbr.rel (0) target = $region5
    $region4: #{sortino_ratio_loss.1} parent=1 // pred_region
      %s10 = ssub.s32 32, 32
      %11 = vsyncadd [#allocation5], %s10
      %s13 = sshll.u32 [#allocation4], 4
      %s14 = int_to_ptr.vmem [resolvable:$true] %s13
      %16 = dma.hbm_to_vmem [thread:$0]  %s0, 32, %s14, [#allocation5]
    $region5: #{sortino_ratio_loss.1} parent=1 // pred_fallthru
      _
    // Predicated region
    $region6: #{sortino_ratio_loss.1} parent=1 // pred_check
      _
    $region7: #{sortino_ratio_loss.1} parent=1 // pred_check_branch
      %18 = sbr.rel (0) target = $region9
    $region8: #{sortino_ratio_loss.1} parent=1 // pred_region
      %19 = dma.done [#allocation5], 32
    $region9: #{sortino_ratio_loss.1} parent=1 // pred_fallthru
      _
    %p20 = scmp.eq.s32.totalorder 0, 0
    // Predicated region
    $region10: #{sortino_ratio_loss.1} parent=1 // pred_check
      %p21 = pneg %p20
    $region11: #{sortino_ratio_loss.1} parent=1 // pred_check_branch
      %23 = sbr.rel (%p21) target = $region13
    $region12: #{sortino_ratio_loss.1} parent=1 // pred_region
      %vm24 = vcmask 1024
      %25 = vst.msk [vmem:[#allocation2] sm:$0x3] %vm24, 0.0
      %26 = vst.msk [vmem:[#allocation3] sm:$0x3] %vm24, 0.0
    $region13: #{sortino_ratio_loss.1} parent=1 // pred_fallthru
      _
    %v27 = vld [vmem:[#allocation4] sm:$0x3]
    %v28 = vsub.f32 0.001, %v27
    %v29 = vmax.f32 %v28, 0.0
    %v30 = vmul.f32 %v29, %v29
    %v31 = vld [vmem:[#allocation2] sm:$0x3]
    %vm32 = vcmask 58368
    %v33 = vsel %vm32, %v27, 0.0
    %34 = vadd.xlane.f32.xlu0 %v33
    %v35 = vpop.xlane.xlu0 %34
    %v36 = vadd.f32 %v31, %v35
    %vm37 = vcmask 1024
    %38 = vst.msk [vmem:[#allocation2] sm:$0x3] %vm37, %v36
    %v39 = vld [vmem:[#allocation3] sm:$0x3]
    %v40 = vsel %vm32, %v30, 0.0
    %41 = vadd.xlane.f32.xlu0 %v40
    %v42 = vpop.xlane.xlu0 %41
    %v43 = vadd.f32 %v39, %v42
    %44 = vst.msk [vmem:[#allocation3] sm:$0x3] %vm37, %v43
    // Predicated region
    $region14: #{sortino_ratio_loss.1} parent=1 // pred_check
      %p45 = pneg %p20
    $region15: #{sortino_ratio_loss.1} parent=1 // pred_check_branch
      %47 = sbr.rel (%p45) target = $region17
    $region16: #{sortino_ratio_loss.1} parent=1 // pred_region
      %v48 = vld [vmem:[#allocation2] sm:$0x3]
      %v49 = vmul.f32 %v48, 0.125
      %v50 = vld [vmem:[#allocation3] sm:$0x3]
      %v51 = vmul.f32 %v50, 0.125
      %v52 = vadd.f32 %v51, 1e-06
      %v53 = vrsqrt.pop %v52
      %v54 = vmul.f32 %v53, 15.874508
      %v55 = vmul.f32 %v49, %v54
      %56 = vst.msk [vmem:[%s1] sm:$0x3] %vm37, %v55
    $region17: #{sortino_ratio_loss.1} parent=1 // pred_fallthru
      _
    // Predicated region
    $region18: #{sortino_ratio_loss.1} parent=1 // pred_check
      _
    $region19: #{sortino_ratio_loss.1} parent=1 // pred_check_branch
      %58 = sbr.rel (0) target = $region21
    $region20: #{sortino_ratio_loss.1} parent=1 // pred_region
      _
    $region21: #{sortino_ratio_loss.1} parent=1 // pred_fallthru
      _
    // Predicated region
    $region22: #{sortino_ratio_loss.1} parent=1 // pred_check
      _
    $region23: #{sortino_ratio_loss.1} parent=1 // pred_check_branch
      %60 = sbr.rel (0) target = $region25
    $region24: #{sortino_ratio_loss.1} parent=1 // pred_region
      _
    $region25: #{sortino_ratio_loss.1} parent=1 // pred_fallthru
      _
    %61 = vsyncpa [#allocation5], 1

</llo_original>
